<compile_context>
chip_gen: v6e
topology: v6e:2x2x1
jax: 0.10.0
libtpu: 0.0.40
codegen_flags: <defaults>
</compile_context>

<pallas_src>
import functools

import jax
import jax.numpy as jnp
from jax.experimental import pallas as pl
from jax.experimental.pallas import tpu as pltpu


LANES = 128                        # f32 lane width
_MAX_ROWS_VMEM = 64                # rows gathered per grid step (VMEM-table path)
_MAX_ROWS_HBM = 128                # rows gathered per grid step (HBM DMA path)
_DMA_WAVE = 16                     # in-flight row DMAs / DMA-semaphore pool size
_VMEM_TABLE_BYTES_MAX = 16 << 20   # fast-path threshold, safe on v5e/v6e/v7x


def _round_up(x, m):
    return ((x + m - 1) // m) * m


# ----------------------------------------------------------------------------
# Path 1: table resident in VMEM, dynamic in-VMEM row gather (no per-row DMAs).
# ----------------------------------------------------------------------------
def _vmem_gather_kernel(rows, num_notes, idx_ref, table_ref, out_ref):
    """Gather `rows` table rows per grid step with dynamic VMEM indexing."""
    base = pl.program_id(0) * rows
    # Static unroll: each iteration is one dynamic (1, d_pad) row load from the
    # VMEM-resident table and one lane-dense store into the output tile.
    for r in range(rows):
        row = jnp.clip(idx_ref[base + r], 0, num_notes - 1)   # scalar, from SMEM
        out_ref[pl.ds(r, 1), :] = table_ref[pl.ds(row, 1), :]


def _gather_vmem(indices_flat, table, n):
    v, d_pad = table.shape
    rows = min(_MAX_ROWS_VMEM, _round_up(n, 8))
    n_pad = _round_up(n, rows)
    idx = jnp.zeros((n_pad,), jnp.int32).at[:n].set(indices_flat.astype(jnp.int32))

    itemsize = jnp.dtype(table.dtype).itemsize
    table_bytes = v * d_pad * itemsize
    block_bytes = rows * d_pad * itemsize
    need = 2 * table_bytes + 4 * block_bytes + (2 << 20)
    # Only raise the scoped VMEM limit when a big table actually needs it
    # (v5e default is 16 MiB); stay well under v7x's 64 MiB physical VMEM.
    vmem_limit = int(min(need, 56 << 20)) if need > (16 << 20) else None

    kernel = functools.partial(_vmem_gather_kernel, rows, v)
    return pl.pallas_call(
        kernel,
        out_shape=jax.ShapeDtypeStruct((n_pad, d_pad), table.dtype),
        grid_spec=pltpu.PrefetchScalarGridSpec(
            num_scalar_prefetch=1,                     # indices -> SMEM
            grid=(n_pad // rows,),
            in_specs=[
                # Whole table in VMEM; constant block index => fetched once
                # per core, reused across every grid step.
                pl.BlockSpec((v, d_pad), lambda i, idx_ref: (0, 0)),
            ],
            out_specs=pl.BlockSpec((rows, d_pad), lambda i, idx_ref: (i, 0)),
        ),
        compiler_params=pltpu.CompilerParams(
            dimension_semantics=("parallel",),         # shards across v7x's 2 TCs
            vmem_limit_bytes=vmem_limit,
        ),
    )(idx, table)


# ----------------------------------------------------------------------------
# Path 2: table stays in HBM, wave-pipelined row DMAs straight into out_ref.
# ----------------------------------------------------------------------------
def _dma_gather_kernel(rows, wave, num_notes, idx_ref, table_hbm, out_ref, sems):
    """Gather `rows` HBM rows per grid step; <= `wave` DMAs in flight."""
    base = pl.program_id(0) * rows

    def copy(src_row, dst_row, slot):
        return pltpu.make_async_copy(
            table_hbm.at[pl.ds(src_row, 1), :],   # (1, d_pad) row in HBM
            out_ref.at[pl.ds(dst_row, 1), :],     # directly into output tile
            sems.at[slot],
        )

    # Rotating semaphore pool: start DMA r, and only wait for DMA r-wave when
    # its slot is about to be reused => up to `wave` row DMAs in flight while
    # the rest of the block is still being issued.
    for r in range(rows):
        slot = r % wave
        if r >= wave:
            copy(0, r - wave, slot).wait()        # same-size descriptor, frees slot
        row = jnp.clip(idx_ref[base + r], 0, num_notes - 1)
        copy(row, r, slot).start()
    # Drain the last `wave` outstanding DMAs.
    for r in range(rows - wave, rows):
        copy(0, r, r % wave).wait()
    # NOTE: padded filler rows (last step only) gather row 0; they are sliced
    # away by the wrapper.  Skipping them would require conditional waits.


def _gather_hbm(indices_flat, table, n):
    v, d_pad = table.shape
    rows = min(_MAX_ROWS_HBM, _round_up(n, 8))
    wave = min(_DMA_WAVE, rows)
    n_pad = _round_up(n, rows)
    idx = jnp.zeros((n_pad,), jnp.int32).at[:n].set(indices_flat.astype(jnp.int32))

    kernel = functools.partial(_dma_gather_kernel, rows, wave, v)
    return pl.pallas_call(
        kernel,
        out_shape=jax.ShapeDtypeStruct((n_pad, d_pad), table.dtype),
        grid_spec=pltpu.PrefetchScalarGridSpec(
            num_scalar_prefetch=1,                         # indices -> SMEM
            grid=(n_pad // rows,),
            in_specs=[pl.BlockSpec(memory_space=pl.ANY)],  # table stays in HBM
            out_specs=pl.BlockSpec((rows, d_pad), lambda i, idx_ref: (i, 0)),
            scratch_shapes=[pltpu.SemaphoreType.DMA((wave,))],
        ),
        compiler_params=pltpu.CompilerParams(
            dimension_semantics=("parallel",),
        ),
    )(idx, table)


# ----------------------------------------------------------------------------
# Dispatch wrapper.
# ----------------------------------------------------------------------------
def embedding_lookup(indices_flat, table_padded, out_dim, *, force_hbm_path=False):
    """indices_flat: (N,) int ; table_padded: (V, d_pad) f32 -> (N, out_dim) f32."""
    n = int(indices_flat.shape[0])
    v, d_pad = table_padded.shape

    if d_pad % LANES != 0:
        # Callers should pre-pad once at init (hot-path hoist); fall back here.
        d_new = _round_up(d_pad, LANES)
        table_padded = jnp.pad(table_padded, ((0, 0), (0, d_new - d_pad)))
        d_pad = d_new

    table_bytes = v * d_pad * jnp.dtype(table_padded.dtype).itemsize
    if (not force_hbm_path) and table_bytes <= _VMEM_TABLE_BYTES_MAX:
        out = _gather_vmem(indices_flat, table_padded, n)
    else:
        out = _gather_hbm(indices_flat, table_padded, n)
    return out[:n, :out_dim]


# ----------------------------------------------------------------------------
# Decoder module (JAX side).
# ----------------------------------------------------------------------------
class Decoder:
    def __init__(self, note_embedding_dim, num_notes, z_dim, key):
        self.num_notes = num_notes
        self.note_embedding_dim = note_embedding_dim
        self.z_dim = z_dim
        # xavier_normal_ init for the embedding weight (deterministic).
        fan_in, fan_out = num_notes, note_embedding_dim
        std = (2.0 / (fan_in + fan_out)) ** 0.5
        self.note_embedding_weight = (
            std * jax.random.normal(key, (num_notes, note_embedding_dim), jnp.float32)
        )
        # Lane-pad the table ONCE at init (review: hoist padding out of the
        # per-lookup hot path) so every kernel store is a full-lane tile.
        d_pad = _round_up(note_embedding_dim, LANES)
        if d_pad != note_embedding_dim:
            self._table_padded = jnp.pad(
                self.note_embedding_weight, ((0, 0), (0, d_pad - note_embedding_dim))
            )
        else:
            self._table_padded = self.note_embedding_weight

    def note_embedding_layer(self, indices):
        """Pallas-backed equivalent of nn.Embedding lookup."""
        b, t = indices.shape
        flat = indices.reshape(b * t)
        out = embedding_lookup(flat, self._table_padded, self.note_embedding_dim)
        return out.reshape(b, t, self.note_embedding_dim)

    def check_index(self, indices):
        """Host-level debug validity check (mirrors the .cpu() check upstream).

        Single fused device reduce, single host sync; do not call inside jit.
        (The kernels additionally clamp indices, so an unchecked OOB index can
        never trigger an out-of-bounds DMA / VMEM read.)
        """
        mn, mx = jax.device_get((jnp.min(indices), jnp.max(indices)))
        if int(mn) >= 0 and int(mx) < self.num_notes:
            return True
        print("Invalid Values of Indices: ", int(mn), int(mx))
        raise ValueError

    def forward(self, z, score_tensor, train=None):
        # Matches the PyTorch module exactly: forward is a stub.
        # TODO(synk): upstream forward() returns (None, None); no decoder body to port.
        return (None, None)


# ----------------------------------------------------------------------------
if __name__ == "__main__":
    key = jax.random.PRNGKey(0)
    k_w, k_z, k_s = jax.random.split(key, 3)

    note_embedding_dim = 32
    num_notes = 64
    z_dim = 32
    batch, seq = 2, 8

    dec = Decoder(note_embedding_dim, num_notes, z_dim, k_w)

    z = jax.random.normal(k_z, (batch, z_dim), jnp.float32)
    score_tensor = jax.random.randint(k_s, (batch, seq), 0, num_notes, jnp.int32)

    # Exercise the Pallas embedding gather (the module's only real compute).
    assert dec.check_index(score_tensor.reshape(-1))
    emb = dec.note_embedding_layer(score_tensor)          # VMEM fast path
    emb = jax.block_until_ready(emb)

    ref = dec.note_embedding_weight[score_tensor]
    assert emb.shape == (batch, seq, note_embedding_dim)
    assert jnp.allclose(emb, ref, atol=1e-6), "embedding mismatch (VMEM path)"

    # Also exercise the HBM DMA gather path (used for very large tables).
    flat = score_tensor.reshape(-1)
    emb_dma = embedding_lookup(
        flat, dec._table_padded, note_embedding_dim, force_hbm_path=True
    )
    emb_dma = jax.block_until_ready(emb_dma)
    assert jnp.allclose(
        emb_dma.reshape(batch, seq, note_embedding_dim), ref, atol=1e-6
    ), "embedding mismatch (HBM DMA path)"

    # Forward-pass semantics: identical to the PyTorch stub.
    out = dec.forward(z, score_tensor, train=True)
    assert out == (None, None)

    print("KERNEL_OK")
</pallas_src>

<mosaic_0001>
module attributes {stable_mosaic.version = 11 : i64} {
  func.func @_vmem_gather_kernel(%arg0: i32, %arg1: memref<16xi32, #tpu.memory_space<smem>>, %arg2: memref<64x128xf32, #tpu.memory_space<vmem>>, %arg3: memref<16x128xf32, #tpu.memory_space<vmem>>) attributes {dimension_semantics = [#tpu.dimension_semantics<parallel>], iteration_bounds = array<i64: 1>, scalar_prefetch = 1 : i64, scratch_operands = 0 : i64, tpu.core_type = #tpu.core_type<tc>, window_params = [{pipeline_mode = #tpu.pipeline_mode<synchronous>, transform_indices = @transform_0, window_bounds = array<i64: 64, 128>}, {transform_indices = @transform_1, window_bounds = array<i64: 16, 128>}]} {
    %c16_i32 = arith.constant 16 : i32
    %0 = arith.muli %arg0, %c16_i32 : i32
    %c0_i32 = arith.constant 0 : i32
    %1 = arith.addi %0, %c0_i32 : i32
    %2 = arith.index_cast %1 : i32 to index
    %3 = memref.load %arg1[%2] : memref<16xi32, #tpu.memory_space<smem>>
    %c0_i32_0 = arith.constant 0 : i32
    %c63_i32 = arith.constant 63 : i32
    %4 = arith.maxsi %c0_i32_0, %3 : i32
    %5 = arith.minsi %c63_i32, %4 : i32
    %6 = arith.index_cast %5 : i32 to index
    %c0 = arith.constant 0 : index
    %7 = vector.load %arg2[%6, %c0] : memref<64x128xf32, #tpu.memory_space<vmem>>, vector<1x128xf32>
    %c0_1 = arith.constant 0 : index
    %c0_2 = arith.constant 0 : index
    %8 = vector.load %arg3[%c0_1, %c0_2] : memref<16x128xf32, #tpu.memory_space<vmem>>, vector<1x128xf32>
    tpu.vector_store %arg3[%c0_1, %c0_2], %7 {strides = array<i32>} : memref<16x128xf32, #tpu.memory_space<vmem>>, vector<1x128xf32>,
    %c1_i32 = arith.constant 1 : i32
    %9 = arith.addi %0, %c1_i32 : i32
    %10 = arith.index_cast %9 : i32 to index
    %11 = memref.load %arg1[%10] : memref<16xi32, #tpu.memory_space<smem>>
    %c0_i32_3 = arith.constant 0 : i32
    %c63_i32_4 = arith.constant 63 : i32
    %12 = arith.maxsi %c0_i32_3, %11 : i32
    %13 = arith.minsi %c63_i32_4, %12 : i32
    %14 = arith.index_cast %13 : i32 to index
    %c0_5 = arith.constant 0 : index
    %15 = vector.load %arg2[%14, %c0_5] : memref<64x128xf32, #tpu.memory_space<vmem>>, vector<1x128xf32>
    %c1 = arith.constant 1 : index
    %c0_6 = arith.constant 0 : index
    %16 = vector.load %arg3[%c1, %c0_6] : memref<16x128xf32, #tpu.memory_space<vmem>>, vector<1x128xf32>
    tpu.vector_store %arg3[%c1, %c0_6], %15 {strides = array<i32>} : memref<16x128xf32, #tpu.memory_space<vmem>>, vector<1x128xf32>,
    %c2_i32 = arith.constant 2 : i32
    %17 = arith.addi %0, %c2_i32 : i32
    %18 = arith.index_cast %17 : i32 to index
    %19 = memref.load %arg1[%18] : memref<16xi32, #tpu.memory_space<smem>>
    %c0_i32_7 = arith.constant 0 : i32
    %c63_i32_8 = arith.constant 63 : i32
    %20 = arith.maxsi %c0_i32_7, %19 : i32
    %21 = arith.minsi %c63_i32_8, %20 : i32
    %22 = arith.index_cast %21 : i32 to index
    %c0_9 = arith.constant 0 : index
    %23 = vector.load %arg2[%22, %c0_9] : memref<64x128xf32, #tpu.memory_space<vmem>>, vector<1x128xf32>
    %c2 = arith.constant 2 : index
    %c0_10 = arith.constant 0 : index
    %24 = vector.load %arg3[%c2, %c0_10] : memref<16x128xf32, #tpu.memory_space<vmem>>, vector<1x128xf32>
    tpu.vector_store %arg3[%c2, %c0_10], %23 {strides = array<i32>} : memref<16x128xf32, #tpu.memory_space<vmem>>, vector<1x128xf32>,
    %c3_i32 = arith.constant 3 : i32
    %25 = arith.addi %0, %c3_i32 : i32
    %26 = arith.index_cast %25 : i32 to index
    %27 = memref.load %arg1[%26] : memref<16xi32, #tpu.memory_space<smem>>
    %c0_i32_11 = arith.constant 0 : i32
    %c63_i32_12 = arith.constant 63 : i32
    %28 = arith.maxsi %c0_i32_11, %27 : i32
    %29 = arith.minsi %c63_i32_12, %28 : i32
    %30 = arith.index_cast %29 : i32 to index
    %c0_13 = arith.constant 0 : index
    %31 = vector.load %arg2[%30, %c0_13] : memref<64x128xf32, #tpu.memory_space<vmem>>, vector<1x128xf32>
    %c3 = arith.constant 3 : index
    %c0_14 = arith.constant 0 : index
    %32 = vector.load %arg3[%c3, %c0_14] : memref<16x128xf32, #tpu.memory_space<vmem>>, vector<1x128xf32>
    tpu.vector_store %arg3[%c3, %c0_14], %31 {strides = array<i32>} : memref<16x128xf32, #tpu.memory_space<vmem>>, vector<1x128xf32>,
    %c4_i32 = arith.constant 4 : i32
    %33 = arith.addi %0, %c4_i32 : i32
    %34 = arith.index_cast %33 : i32 to index
    %35 = memref.load %arg1[%34] : memref<16xi32, #tpu.memory_space<smem>>
    %c0_i32_15 = arith.constant 0 : i32
    %c63_i32_16 = arith.constant 63 : i32
    %36 = arith.maxsi %c0_i32_15, %35 : i32
    %37 = arith.minsi %c63_i32_16, %36 : i32
    %38 = arith.index_cast %37 : i32 to index
    %c0_17 = arith.constant 0 : index
    %39 = vector.load %arg2[%38, %c0_17] : memref<64x128xf32, #tpu.memory_space<vmem>>, vector<1x128xf32>
    %c4 = arith.constant 4 : index
    %c0_18 = arith.constant 0 : index
    %40 = vector.load %arg3[%c4, %c0_18] : memref<16x128xf32, #tpu.memory_space<vmem>>, vector<1x128xf32>
    tpu.vector_store %arg3[%c4, %c0_18], %39 {strides = array<i32>} : memref<16x128xf32, #tpu.memory_space<vmem>>, vector<1x128xf32>,
    %c5_i32 = arith.constant 5 : i32
    %41 = arith.addi %0, %c5_i32 : i32
    %42 = arith.index_cast %41 : i32 to index
    %43 = memref.load %arg1[%42] : memref<16xi32, #tpu.memory_space<smem>>
    %c0_i32_19 = arith.constant 0 : i32
    %c63_i32_20 = arith.constant 63 : i32
    %44 = arith.maxsi %c0_i32_19, %43 : i32
    %45 = arith.minsi %c63_i32_20, %44 : i32
    %46 = arith.index_cast %45 : i32 to index
    %c0_21 = arith.constant 0 : index
    %47 = vector.load %arg2[%46, %c0_21] : memref<64x128xf32, #tpu.memory_space<vmem>>, vector<1x128xf32>
    %c5 = arith.constant 5 : index
    %c0_22 = arith.constant 0 : index
    %48 = vector.load %arg3[%c5, %c0_22] : memref<16x128xf32, #tpu.memory_space<vmem>>, vector<1x128xf32>
    tpu.vector_store %arg3[%c5, %c0_22], %47 {strides = array<i32>} : memref<16x128xf32, #tpu.memory_space<vmem>>, vector<1x128xf32>,
    %c6_i32 = arith.constant 6 : i32
    %49 = arith.addi %0, %c6_i32 : i32
    %50 = arith.index_cast %49 : i32 to index
    %51 = memref.load %arg1[%50] : memref<16xi32, #tpu.memory_space<smem>>
    %c0_i32_23 = arith.constant 0 : i32
    %c63_i32_24 = arith.constant 63 : i32
    %52 = arith.maxsi %c0_i32_23, %51 : i32
    %53 = arith.minsi %c63_i32_24, %52 : i32
    %54 = arith.index_cast %53 : i32 to index
    %c0_25 = arith.constant 0 : index
    %55 = vector.load %arg2[%54, %c0_25] : memref<64x128xf32, #tpu.memory_space<vmem>>, vector<1x128xf32>
    %c6 = arith.constant 6 : index
    %c0_26 = arith.constant 0 : index
    %56 = vector.load %arg3[%c6, %c0_26] : memref<16x128xf32, #tpu.memory_space<vmem>>, vector<1x128xf32>
    tpu.vector_store %arg3[%c6, %c0_26], %55 {strides = array<i32>} : memref<16x128xf32, #tpu.memory_space<vmem>>, vector<1x128xf32>,
    %c7_i32 = arith.constant 7 : i32
    %57 = arith.addi %0, %c7_i32 : i32
    %58 = arith.index_cast %57 : i32 to index
    %59 = memref.load %arg1[%58] : memref<16xi32, #tpu.memory_space<smem>>
    %c0_i32_27 = arith.constant 0 : i32
    %c63_i32_28 = arith.constant 63 : i32
    %60 = arith.maxsi %c0_i32_27, %59 : i32
    %61 = arith.minsi %c63_i32_28, %60 : i32
    %62 = arith.index_cast %61 : i32 to index
    %c0_29 = arith.constant 0 : index
    %63 = vector.load %arg2[%62, %c0_29] : memref<64x128xf32, #tpu.memory_space<vmem>>, vector<1x128xf32>
    %c7 = arith.constant 7 : index
    %c0_30 = arith.constant 0 : index
    %64 = vector.load %arg3[%c7, %c0_30] : memref<16x128xf32, #tpu.memory_space<vmem>>, vector<1x128xf32>
    tpu.vector_store %arg3[%c7, %c0_30], %63 {strides = array<i32>} : memref<16x128xf32, #tpu.memory_space<vmem>>, vector<1x128xf32>,
    %c8_i32 = arith.constant 8 : i32
    %65 = arith.addi %0, %c8_i32 : i32
    %66 = arith.index_cast %65 : i32 to index
    %67 = memref.load %arg1[%66] : memref<16xi32, #tpu.memory_space<smem>>
    %c0_i32_31 = arith.constant 0 : i32
    %c63_i32_32 = arith.constant 63 : i32
    %68 = arith.maxsi %c0_i32_31, %67 : i32
    %69 = arith.minsi %c63_i32_32, %68 : i32
    %70 = arith.index_cast %69 : i32 to index
    %c0_33 = arith.constant 0 : index
    %71 = vector.load %arg2[%70, %c0_33] : memref<64x128xf32, #tpu.memory_space<vmem>>, vector<1x128xf32>
    %c8 = arith.constant 8 : index
    %c0_34 = arith.constant 0 : index
    %72 = vector.load %arg3[%c8, %c0_34] : memref<16x128xf32, #tpu.memory_space<vmem>>, vector<1x128xf32>
    tpu.vector_store %arg3[%c8, %c0_34], %71 {strides = array<i32>} : memref<16x128xf32, #tpu.memory_space<vmem>>, vector<1x128xf32>,
    %c9_i32 = arith.constant 9 : i32
    %73 = arith.addi %0, %c9_i32 : i32
    %74 = arith.index_cast %73 : i32 to index
    %75 = memref.load %arg1[%74] : memref<16xi32, #tpu.memory_space<smem>>
    %c0_i32_35 = arith.constant 0 : i32
    %c63_i32_36 = arith.constant 63 : i32
    %76 = arith.maxsi %c0_i32_35, %75 : i32
    %77 = arith.minsi %c63_i32_36, %76 : i32
    %78 = arith.index_cast %77 : i32 to index
    %c0_37 = arith.constant 0 : index
    %79 = vector.load %arg2[%78, %c0_37] : memref<64x128xf32, #tpu.memory_space<vmem>>, vector<1x128xf32>
    %c9 = arith.constant 9 : index
    %c0_38 = arith.constant 0 : index
    %80 = vector.load %arg3[%c9, %c0_38] : memref<16x128xf32, #tpu.memory_space<vmem>>, vector<1x128xf32>
    tpu.vector_store %arg3[%c9, %c0_38], %79 {strides = array<i32>} : memref<16x128xf32, #tpu.memory_space<vmem>>, vector<1x128xf32>,
    %c10_i32 = arith.constant 10 : i32
    %81 = arith.addi %0, %c10_i32 : i32
    %82 = arith.index_cast %81 : i32 to index
    %83 = memref.load %arg1[%82] : memref<16xi32, #tpu.memory_space<smem>>
    %c0_i32_39 = arith.constant 0 : i32
    %c63_i32_40 = arith.constant 63 : i32
    %84 = arith.maxsi %c0_i32_39, %83 : i32
    %85 = arith.minsi %c63_i32_40, %84 : i32
    %86 = arith.index_cast %85 : i32 to index
    %c0_41 = arith.constant 0 : index
    %87 = vector.load %arg2[%86, %c0_41] : memref<64x128xf32, #tpu.memory_space<vmem>>, vector<1x128xf32>
    %c10 = arith.constant 10 : index
    %c0_42 = arith.constant 0 : index
    %88 = vector.load %arg3[%c10, %c0_42] : memref<16x128xf32, #tpu.memory_space<vmem>>, vector<1x128xf32>
    tpu.vector_store %arg3[%c10, %c0_42], %87 {strides = array<i32>} : memref<16x128xf32, #tpu.memory_space<vmem>>, vector<1x128xf32>,
    %c11_i32 = arith.constant 11 : i32
    %89 = arith.addi %0, %c11_i32 : i32
    %90 = arith.index_cast %89 : i32 to index
    %91 = memref.load %arg1[%90] : memref<16xi32, #tpu.memory_space<smem>>
    %c0_i32_43 = arith.constant 0 : i32
    %c63_i32_44 = arith.constant 63 : i32
    %92 = arith.maxsi %c0_i32_43, %91 : i32
    %93 = arith.minsi %c63_i32_44, %92 : i32
    %94 = arith.index_cast %93 : i32 to index
    %c0_45 = arith.constant 0 : index
    %95 = vector.load %arg2[%94, %c0_45] : memref<64x128xf32, #tpu.memory_space<vmem>>, vector<1x128xf32>
    %c11 = arith.constant 11 : index
    %c0_46 = arith.constant 0 : index
    %96 = vector.load %arg3[%c11, %c0_46] : memref<16x128xf32, #tpu.memory_space<vmem>>, vector<1x128xf32>
    tpu.vector_store %arg3[%c11, %c0_46], %95 {strides = array<i32>} : memref<16x128xf32, #tpu.memory_space<vmem>>, vector<1x128xf32>,
    %c12_i32 = arith.constant 12 : i32
    %97 = arith.addi %0, %c12_i32 : i32
    %98 = arith.index_cast %97 : i32 to index
    %99 = memref.load %arg1[%98] : memref<16xi32, #tpu.memory_space<smem>>
    %c0_i32_47 = arith.constant 0 : i32
    %c63_i32_48 = arith.constant 63 : i32
    %100 = arith.maxsi %c0_i32_47, %99 : i32
    %101 = arith.minsi %c63_i32_48, %100 : i32
    %102 = arith.index_cast %101 : i32 to index
    %c0_49 = arith.constant 0 : index
    %103 = vector.load %arg2[%102, %c0_49] : memref<64x128xf32, #tpu.memory_space<vmem>>, vector<1x128xf32>
    %c12 = arith.constant 12 : index
    %c0_50 = arith.constant 0 : index
    %104 = vector.load %arg3[%c12, %c0_50] : memref<16x128xf32, #tpu.memory_space<vmem>>, vector<1x128xf32>
    tpu.vector_store %arg3[%c12, %c0_50], %103 {strides = array<i32>} : memref<16x128xf32, #tpu.memory_space<vmem>>, vector<1x128xf32>,
    %c13_i32 = arith.constant 13 : i32
    %105 = arith.addi %0, %c13_i32 : i32
    %106 = arith.index_cast %105 : i32 to index
    %107 = memref.load %arg1[%106] : memref<16xi32, #tpu.memory_space<smem>>
    %c0_i32_51 = arith.constant 0 : i32
    %c63_i32_52 = arith.constant 63 : i32
    %108 = arith.maxsi %c0_i32_51, %107 : i32
    %109 = arith.minsi %c63_i32_52, %108 : i32
    %110 = arith.index_cast %109 : i32 to index
    %c0_53 = arith.constant 0 : index
    %111 = vector.load %arg2[%110, %c0_53] : memref<64x128xf32, #tpu.memory_space<vmem>>, vector<1x128xf32>
    %c13 = arith.constant 13 : index
    %c0_54 = arith.constant 0 : index
    %112 = vector.load %arg3[%c13, %c0_54] : memref<16x128xf32, #tpu.memory_space<vmem>>, vector<1x128xf32>
    tpu.vector_store %arg3[%c13, %c0_54], %111 {strides = array<i32>} : memref<16x128xf32, #tpu.memory_space<vmem>>, vector<1x128xf32>,
    %c14_i32 = arith.constant 14 : i32
    %113 = arith.addi %0, %c14_i32 : i32
    %114 = arith.index_cast %113 : i32 to index
    %115 = memref.load %arg1[%114] : memref<16xi32, #tpu.memory_space<smem>>
    %c0_i32_55 = arith.constant 0 : i32
    %c63_i32_56 = arith.constant 63 : i32
    %116 = arith.maxsi %c0_i32_55, %115 : i32
    %117 = arith.minsi %c63_i32_56, %116 : i32
    %118 = arith.index_cast %117 : i32 to index
    %c0_57 = arith.constant 0 : index
    %119 = vector.load %arg2[%118, %c0_57] : memref<64x128xf32, #tpu.memory_space<vmem>>, vector<1x128xf32>
    %c14 = arith.constant 14 : index
    %c0_58 = arith.constant 0 : index
    %120 = vector.load %arg3[%c14, %c0_58] : memref<16x128xf32, #tpu.memory_space<vmem>>, vector<1x128xf32>
    tpu.vector_store %arg3[%c14, %c0_58], %119 {strides = array<i32>} : memref<16x128xf32, #tpu.memory_space<vmem>>, vector<1x128xf32>,
    %c15_i32 = arith.constant 15 : i32
    %121 = arith.addi %0, %c15_i32 : i32
    %122 = arith.index_cast %121 : i32 to index
    %123 = memref.load %arg1[%122] : memref<16xi32, #tpu.memory_space<smem>>
    %c0_i32_59 = arith.constant 0 : i32
    %c63_i32_60 = arith.constant 63 : i32
    %124 = arith.maxsi %c0_i32_59, %123 : i32
    %125 = arith.minsi %c63_i32_60, %124 : i32
    %126 = arith.index_cast %125 : i32 to index
    %c0_61 = arith.constant 0 : index
    %127 = vector.load %arg2[%126, %c0_61] : memref<64x128xf32, #tpu.memory_space<vmem>>, vector<1x128xf32>
    %c15 = arith.constant 15 : index
    %c0_62 = arith.constant 0 : index
    %128 = vector.load %arg3[%c15, %c0_62] : memref<16x128xf32, #tpu.memory_space<vmem>>, vector<1x128xf32>
    tpu.vector_store %arg3[%c15, %c0_62], %127 {strides = array<i32>} : memref<16x128xf32, #tpu.memory_space<vmem>>, vector<1x128xf32>,
    return
  }
  func.func @transform_0(%arg0: i32, %arg1: memref<16xi32, #tpu.memory_space<smem>>) -> (i32, i32) {
    %c0_i32 = arith.constant 0 : i32
    %c0_i32_0 = arith.constant 0 : i32
    %c0_i32_1 = arith.constant 0 : i32
    return %c0_i32, %c0_i32_0 : i32, i32
  }
  func.func @transform_1(%arg0: i32, %arg1: memref<16xi32, #tpu.memory_space<smem>>) -> (i32, i32) {
    %c0_i32 = arith.constant 0 : i32
    %c0_i32_0 = arith.constant 0 : i32
    return %arg0, %c0_i32 : i32, i32
  }
}

</mosaic_0001>

<llo_original>
// kernel: tpu_custom_call.1
$region0: #{tpu_custom_call.1}
  #allocation0 [shape = 'u32[]', space=smem, size = 0x4, offset = 0x4, fixed_abs, tag = 'smem constant byte address 0x4 - core index']
  #allocation1 [shape = 'u32[144,128]{1,0:T(1,128)}', space=vmem, size = 0x12000, scoped, tag = 'internal scratch']
  #allocation2 [shape = 's32[1]{0}', space=sflag, size = 0x4, scoped, tag = 'scoped memory for tpu_custom_call.1']
  #allocation3 [shape = 'u8[512]{0}', space=smem, size = 0x200, scoped, tag = 'prefetched SMEM operand 0']
  %s0 = inlined_call_operand.hbm [shape: s32[16], index: 0, kind: input, shape index: {}]
  %s1 = inlined_call_operand.hbm [shape: f32[64,128], index: 1, kind: input, shape index: {}]
  %s2 = inlined_call_operand.hbm [shape: f32[16,128], index: 2, kind: output, shape index: {}]
  %s3 = sld [smem:[#allocation0]]
  $region18: #{tpu_custom_call.1} parent=0
    _
  %s5 = ssub.s32 1, %s3
  %s6 = scalar_select 0, %s5, %s3
  %8 = dma.hbm_to_smem %s0, 16, [#allocation3], [#allocation2]
  %9 = dma.done [#allocation2], 16
  %10 = sfence
  $region1: #{tpu_custom_call.1} parent=0
    #allocation4 [shape = 'u8[32768]{0}', space=vmem, size = 0x8000, scoped, tag = 'input window, operand 1, single buffered']
    #allocation5 [shape = 's32[1]{0}', space=sflag, size = 0x4, scoped, tag = 'scoped memory for tpu_custom_call.1']
    #allocation6 [shape = 's32[1]{0}', space=sflag, size = 0x4, scoped, tag = 'scoped memory for tpu_custom_call.1']
    #allocation7 [shape = 'u8[8192]{0}', space=vmem, size = 0x2000, scoped, tag = 'output window, operand 0, single buffered']
    %11 = vsyncpa [#allocation5], 0
    %12 = vsyncpa [#allocation6], 0
    // Predicated region
    $region2: #{tpu_custom_call.1} parent=1 // pred_check
      _
    $region3: #{tpu_custom_call.1} parent=1 // pred_check_branch
      %14 = sbr.rel (0) target = $region5
    $region4: #{tpu_custom_call.1} parent=1 // pred_region
      %s16 = ssub.s32 1024, 1024
      %17 = vsyncadd [#allocation5], %s16
      %s18 = sshll.u32 [#allocation4], 4
      %s19 = int_to_ptr.vmem [resolvable:$true] %s18
      %24 = dma.hbm_to_vmem [thread:$0]  %s1, 1024, %s19, [#allocation5], 128, 128, 8
    $region5: #{tpu_custom_call.1} parent=1 // pred_fallthru
      _
    // Predicated region
    $region6: #{tpu_custom_call.1} parent=1 // pred_check
      _
    $region7: #{tpu_custom_call.1} parent=1 // pred_check_branch
      %26 = sbr.rel (0) target = $region9
    $region8: #{tpu_custom_call.1} parent=1 // pred_region
      %27 = dma.done [#allocation5], 1024
    $region9: #{tpu_custom_call.1} parent=1 // pred_fallthru
      _
    %s28 = smul.u32 0, 16
    %s29 = sld [smem:[#allocation3 + %s28]]
    %p30 = scmp.gt.s32.totalorder %s29, 0
    %s31 = scalar_select %p30, %s29, 0
    %p32 = scmp.lt.s32.totalorder %s31, 63
    %s33 = scalar_select %p32, %s31, 63
    %s34 = scalar_lea.vmem [#allocation4], %s33
    %v35 = vld [vmem:[%s34] sm:$0x1]
    %36 = vst [vmem:[#allocation7] sm:$0x1] %v35
    %s37 = sadd.s32 %s28, 1
    %s38 = sld [smem:[#allocation3 + %s37]]
    %p39 = scmp.gt.s32.totalorder %s38, 0
    %s40 = scalar_select %p39, %s38, 0
    %p41 = scmp.lt.s32.totalorder %s40, 63
    %s42 = scalar_select %p41, %s40, 63
    %s43 = scalar_lea.vmem [#allocation4], %s42
    %v44 = vld [vmem:[%s43] sm:$0x1]
    %45 = vst [vmem:[#allocation7 + $0x1] sm:$0x1] %v44
    %s46 = sadd.s32 %s28, 2
    %s47 = sld [smem:[#allocation3 + %s46]]
    %p48 = scmp.gt.s32.totalorder %s47, 0
    %s49 = scalar_select %p48, %s47, 0
    %p50 = scmp.lt.s32.totalorder %s49, 63
    %s51 = scalar_select %p50, %s49, 63
    %s52 = scalar_lea.vmem [#allocation4], %s51
    %v53 = vld [vmem:[%s52] sm:$0x1]
    %54 = vst [vmem:[#allocation7 + $0x2] sm:$0x1] %v53
    %s55 = sadd.s32 %s28, 3
    %s56 = sld [smem:[#allocation3 + %s55]]
    %p57 = scmp.gt.s32.totalorder %s56, 0
    %s58 = scalar_select %p57, %s56, 0
    %p59 = scmp.lt.s32.totalorder %s58, 63
    %s60 = scalar_select %p59, %s58, 63
    %s61 = scalar_lea.vmem [#allocation4], %s60
    %v62 = vld [vmem:[%s61] sm:$0x1]
    %63 = vst [vmem:[#allocation7 + $0x3] sm:$0x1] %v62
    %s64 = sadd.s32 %s28, 4
    %s65 = sld [smem:[#allocation3 + %s64]]
    %p66 = scmp.gt.s32.totalorder %s65, 0
    %s67 = scalar_select %p66, %s65, 0
    %p68 = scmp.lt.s32.totalorder %s67, 63
    %s69 = scalar_select %p68, %s67, 63
    %s70 = scalar_lea.vmem [#allocation4], %s69
    %v71 = vld [vmem:[%s70] sm:$0x1]
    %72 = vst [vmem:[#allocation7 + $0x4] sm:$0x1] %v71
    %s73 = sadd.s32 %s28, 5
    %s74 = sld [smem:[#allocation3 + %s73]]
    %p75 = scmp.gt.s32.totalorder %s74, 0
    %s76 = scalar_select %p75, %s74, 0
    %p77 = scmp.lt.s32.totalorder %s76, 63
    %s78 = scalar_select %p77, %s76, 63
    %s79 = scalar_lea.vmem [#allocation4], %s78
    %v80 = vld [vmem:[%s79] sm:$0x1]
    %81 = vst [vmem:[#allocation7 + $0x5] sm:$0x1] %v80
    %s82 = sadd.s32 %s28, 6
    %s83 = sld [smem:[#allocation3 + %s82]]
    %p84 = scmp.gt.s32.totalorder %s83, 0
    %s85 = scalar_select %p84, %s83, 0
    %p86 = scmp.lt.s32.totalorder %s85, 63
    %s87 = scalar_select %p86, %s85, 63
    %s88 = scalar_lea.vmem [#allocation4], %s87
    %v89 = vld [vmem:[%s88] sm:$0x1]
    %90 = vst [vmem:[#allocation7 + $0x6] sm:$0x1] %v89
    %s91 = sadd.s32 %s28, 7
    %s92 = sld [smem:[#allocation3 + %s91]]
    %p93 = scmp.gt.s32.totalorder %s92, 0
    %s94 = scalar_select %p93, %s92, 0
    %p95 = scmp.lt.s32.totalorder %s94, 63
    %s96 = scalar_select %p95, %s94, 63
    %s97 = scalar_lea.vmem [#allocation4], %s96
    %v98 = vld [vmem:[%s97] sm:$0x1]
    %99 = vst [vmem:[#allocation7 + $0x7] sm:$0x1] %v98
    %s100 = sadd.s32 %s28, 8
    %s101 = sld [smem:[#allocation3 + %s100]]
    %p102 = scmp.gt.s32.totalorder %s101, 0
    %s103 = scalar_select %p102, %s101, 0
    %p104 = scmp.lt.s32.totalorder %s103, 63
    %s105 = scalar_select %p104, %s103, 63
    %s106 = scalar_lea.vmem [#allocation4], %s105
    %v107 = vld [vmem:[%s106] sm:$0x1]
    %108 = vst [vmem:[#allocation7 + $0x8] sm:$0x1] %v107
    %s109 = sadd.s32 %s28, 9
    %s110 = sld [smem:[#allocation3 + %s109]]
    %p111 = scmp.gt.s32.totalorder %s110, 0
    %s112 = scalar_select %p111, %s110, 0
    %p113 = scmp.lt.s32.totalorder %s112, 63
    %s114 = scalar_select %p113, %s112, 63
    %s115 = scalar_lea.vmem [#allocation4], %s114
    %v116 = vld [vmem:[%s115] sm:$0x1]
    %117 = vst [vmem:[#allocation7 + $0x9] sm:$0x1] %v116
    %s118 = sadd.s32 %s28, 10
    %s119 = sld [smem:[#allocation3 + %s118]]
    %p120 = scmp.gt.s32.totalorder %s119, 0
    %s121 = scalar_select %p120, %s119, 0
    %p122 = scmp.lt.s32.totalorder %s121, 63
    %s123 = scalar_select %p122, %s121, 63
    %s124 = scalar_lea.vmem [#allocation4], %s123
    %v125 = vld [vmem:[%s124] sm:$0x1]
    %126 = vst [vmem:[#allocation7 + $0xa] sm:$0x1] %v125
    %s127 = sadd.s32 %s28, 11
    %s128 = sld [smem:[#allocation3 + %s127]]
    %p129 = scmp.gt.s32.totalorder %s128, 0
    %s130 = scalar_select %p129, %s128, 0
    %p131 = scmp.lt.s32.totalorder %s130, 63
    %s132 = scalar_select %p131, %s130, 63
    %s133 = scalar_lea.vmem [#allocation4], %s132
    %v134 = vld [vmem:[%s133] sm:$0x1]
    %135 = vst [vmem:[#allocation7 + $0xb] sm:$0x1] %v134
    %s136 = sadd.s32 %s28, 12
    %s137 = sld [smem:[#allocation3 + %s136]]
    %p138 = scmp.gt.s32.totalorder %s137, 0
    %s139 = scalar_select %p138, %s137, 0
    %p140 = scmp.lt.s32.totalorder %s139, 63
    %s141 = scalar_select %p140, %s139, 63
    %s142 = scalar_lea.vmem [#allocation4], %s141
    %v143 = vld [vmem:[%s142] sm:$0x1]
    %144 = vst [vmem:[#allocation7 + $0xc] sm:$0x1] %v143
    %s145 = sadd.s32 %s28, 13
    %s146 = sld [smem:[#allocation3 + %s145]]
    %p147 = scmp.gt.s32.totalorder %s146, 0
    %s148 = scalar_select %p147, %s146, 0
    %p149 = scmp.lt.s32.totalorder %s148, 63
    %s150 = scalar_select %p149, %s148, 63
    %s151 = scalar_lea.vmem [#allocation4], %s150
    %v152 = vld [vmem:[%s151] sm:$0x1]
    %153 = vst [vmem:[#allocation7 + $0xd] sm:$0x1] %v152
    %s154 = sadd.s32 %s28, 14
    %s155 = sld [smem:[#allocation3 + %s154]]
    %p156 = scmp.gt.s32.totalorder %s155, 0
    %s157 = scalar_select %p156, %s155, 0
    %p158 = scmp.lt.s32.totalorder %s157, 63
    %s159 = scalar_select %p158, %s157, 63
    %s160 = scalar_lea.vmem [#allocation4], %s159
    %v161 = vld [vmem:[%s160] sm:$0x1]
    %162 = vst [vmem:[#allocation7 + $0xe] sm:$0x1] %v161
    %s163 = sadd.s32 %s28, 15
    %s164 = sld [smem:[#allocation3 + %s163]]
    %p165 = scmp.gt.s32.totalorder %s164, 0
    %s166 = scalar_select %p165, %s164, 0
    %p167 = scmp.lt.s32.totalorder %s166, 63
    %s168 = scalar_select %p167, %s166, 63
    %s169 = scalar_lea.vmem [#allocation4], %s168
    %v170 = vld [vmem:[%s169] sm:$0x1]
    %171 = vst [vmem:[#allocation7 + $0xf] sm:$0x1] %v170
    // Predicated region
    $region10: #{tpu_custom_call.1} parent=1 // pred_check
      _
    $region11: #{tpu_custom_call.1} parent=1 // pred_check_branch
      %173 = sbr.rel (0) target = $region13
    $region12: #{tpu_custom_call.1} parent=1 // pred_region
      %s175 = ssub.s32 256, 256
      %176 = vsyncadd [#allocation6], %s175
      %s177 = sshll.u32 [#allocation7], 4
      %s178 = int_to_ptr.vmem [resolvable:$true] %s177
      %183 = dma.vmem_to_hbm [thread:$0]  %s178, 256, %s2, [#allocation6], 128, 128, 8
    $region13: #{tpu_custom_call.1} parent=1 // pred_fallthru
      _
    // Predicated region
    $region14: #{tpu_custom_call.1} parent=1 // pred_check
      _
    $region15: #{tpu_custom_call.1} parent=1 // pred_check_branch
      %185 = sbr.rel (0) target = $region17
    $region16: #{tpu_custom_call.1} parent=1 // pred_region
      %186 = dma.done [#allocation6], 256
    $region17: #{tpu_custom_call.1} parent=1 // pred_fallthru
      _
    %187 = vsyncpa [#allocation5], 1
    %188 = vsyncpa [#allocation6], 1

</llo_original>
